<compile_context>
chip_gen: v5e
topology: v5e:2x2
jax: 0.10.0
libtpu: 0.0.40
codegen_flags: <defaults>
</compile_context>

<pallas_src>
import math

import jax
import jax.numpy as jnp
import numpy as np
from jax.experimental import pallas as pl
from jax.experimental.pallas import tpu as pltpu


def _cdiv(a, b):
    return -(-a // b)


def _round_up(a, b):
    return _cdiv(a, b) * b


def _matmul_kernel(x_ref, w_ref, o_ref):
    """o tile = x tile @ W tile  (MXU matmul, f32 accumulation)."""
    o_ref[...] = jnp.dot(
        x_ref[...], w_ref[...], preferred_element_type=jnp.float32
    ).astype(o_ref.dtype)


def identity_forward(x, lr_fc_weight=None, *, pod_rank=0, svd_rank=0,
                     block_rows=16384):
    """Pallas implementation of Identity.forward.

    Returns (x_out, outlier_x) matching quad_svd.TensorPack(x, outlier_x).
    """
    assert svd_rank == 0 or pod_rank == 0

    if pod_rank > 0:
        # Pure slicing -- no compute, no kernel needed.
        return x[..., pod_rank:], x[..., :pod_rank]

    if svd_rank == 0:
        return x, None

    # svd_rank > 0: outlier_x = lr_fc(x) = x @ W^T   (W: (R, H), no bias)
    orig_shape = x.shape
    H = orig_shape[-1]
    M = math.prod(orig_shape[:-1])
    R = lr_fc_weight.shape[0]
    dtype = x.dtype
    itemsize = jnp.dtype(dtype).itemsize

    wt = lr_fc_weight.T.astype(dtype)                       # (H, R)

    # Lane-dense repack factor: fold F input rows into one 128-lane output row.
    F = 128 // R if (0 < R <= 128 and 128 % R == 0) else 1

    if F > 1 and M % F == 0:
        # ---- Lane-dense block-diagonal path (preferred) -------------------
        M16 = M // F
        K = F * H                                           # 512
        N = F * R                                           # 128
        x16 = x.reshape(M16, K)                             # free contiguous view
        # Block-diagonal weight: kron(I_F, W^T) -> (K, N). Off-diagonal blocks
        # are exact zeros, diagonal blocks are exact copies of W^T -> bit-exact.
        w_blk = jnp.kron(jnp.eye(F, dtype=dtype), wt)

        target16 = max(1, block_rows // F)                  # rows of x16 per tile
        if M16 <= 16:
            tm16 = M16                                      # single full block
        else:
            # >=2 balanced grid steps so v7x megacore gets work on both TCs;
            # tile rounded to a sublane multiple of 8.
            nsteps = max(2, _cdiv(M16, target16))
            tm16 = min(M16, _round_up(_cdiv(M16, nsteps), 8))
        grid = (_cdiv(M16, tm16),)

        cost = pl.CostEstimate(
            flops=2 * M16 * K * N,
            transcendentals=0,
            bytes_accessed=(M * H + K * N + M * R) * itemsize,
        )

        o16 = pl.pallas_call(
            _matmul_kernel,
            out_shape=jax.ShapeDtypeStruct((M16, N), dtype),
            grid_spec=pl.GridSpec(
                grid=grid,
                in_specs=[
                    pl.BlockSpec((tm16, K), lambda i: (i, 0)),   # x16: tiled over rows
                    pl.BlockSpec((K, N), lambda i: (0, 0)),      # W_blk: VMEM-resident
                ],
                out_specs=pl.BlockSpec((tm16, N), lambda i: (i, 0)),
            ),
            compiler_params=pltpu.CompilerParams(
                dimension_semantics=("parallel",),               # megacore on v7x
            ),
            cost_estimate=cost,
        )(x16, w_blk)

        # (M16, F*R) is byte-identical row-major to (M, R) -> free reshape.
        outlier_x = o16.reshape(orig_shape[:-1] + (R,))
        return x, outlier_x

    # ---- Fallback: lane-padded path for M % F != 0 -------------------------
    # Padded VMEM footprint per (tm,32) f32 block is tm*128*4 bytes; tm=4096
    # keeps double-buffered in+out at ~8 MiB, under v5e's 16 MiB scoped default.
    x2 = x.reshape(M, H)
    tm = min(4096, M)                                        # mult of 8, or == M
    grid = (_cdiv(M, tm),)

    cost = pl.CostEstimate(
        flops=2 * M * H * R,
        transcendentals=0,
        bytes_accessed=(M * H + H * R + M * R) * itemsize,
    )

    o = pl.pallas_call(
        _matmul_kernel,
        out_shape=jax.ShapeDtypeStruct((M, R), dtype),
        grid_spec=pl.GridSpec(
            grid=grid,
            in_specs=[
                pl.BlockSpec((tm, H), lambda i: (i, 0)),         # x: tiled over M
                pl.BlockSpec((H, R), lambda i: (0, 0)),          # W^T: resident
            ],
            out_specs=pl.BlockSpec((tm, R), lambda i: (i, 0)),
        ),
        compiler_params=pltpu.CompilerParams(
            dimension_semantics=("parallel",),
        ),
        cost_estimate=cost,
    )(x2, wt)

    outlier_x = o.reshape(orig_shape[:-1] + (R,))
    return x, outlier_x


if __name__ == "__main__":
    hidden_size, pod_rank, svd_rank = 32, 0, 8
    batch, seq = 2, 8

    key = jax.random.PRNGKey(0)
    kx, kw = jax.random.split(key)
    x = jax.random.normal(kx, (batch, seq, hidden_size), dtype=jnp.float32)
    # nn.Linear(hidden_size, svd_rank, bias=False) default init:
    # U(-1/sqrt(hidden), 1/sqrt(hidden)), shape (svd_rank, hidden_size).
    bound = 1.0 / math.sqrt(hidden_size)
    lr_fc_weight = jax.random.uniform(
        kw, (svd_rank, hidden_size), dtype=jnp.float32,
        minval=-bound, maxval=bound)

    # svd_rank > 0, M % 16 == 0  ->  lane-dense block-diagonal Pallas kernel.
    x_out, outlier = identity_forward(
        x, lr_fc_weight, pod_rank=pod_rank, svd_rank=svd_rank)
    jax.block_until_ready((x_out, outlier))
    o_ref = jnp.einsum("...h,rh->...r", x, lr_fc_weight)
    np.testing.assert_array_equal(np.asarray(x_out), np.asarray(x))
    np.testing.assert_allclose(np.asarray(outlier), np.asarray(o_ref),
                               rtol=1e-5, atol=1e-5)

    # svd_rank > 0, M % 16 != 0  ->  lane-padded fallback kernel.
    x_odd = jax.random.normal(kx, (batch, 9, hidden_size), dtype=jnp.float32)
    x_odd_out, outlier_odd = identity_forward(
        x_odd, lr_fc_weight, pod_rank=pod_rank, svd_rank=svd_rank)
    jax.block_until_ready((x_odd_out, outlier_odd))
    o_odd_ref = jnp.einsum("...h,rh->...r", x_odd, lr_fc_weight)
    np.testing.assert_array_equal(np.asarray(x_odd_out), np.asarray(x_odd))
    np.testing.assert_allclose(np.asarray(outlier_odd), np.asarray(o_odd_ref),
                               rtol=1e-5, atol=1e-5)

    # pod_rank > 0 path (pure slice, wrapper-level; svd_rank must be 0).
    xp_out, xp_outlier = identity_forward(x, pod_rank=4, svd_rank=0)
    jax.block_until_ready((xp_out, xp_outlier))
    np.testing.assert_array_equal(np.asarray(xp_outlier), np.asarray(x[..., :4]))
    np.testing.assert_array_equal(np.asarray(xp_out), np.asarray(x[..., 4:]))

    print("KERNEL_OK")
</pallas_src>

<mosaic_0001>
module attributes {stable_mosaic.version = 11 : i64} {
  func.func @_matmul_kernel(%arg0: i32, %arg1: memref<1x512xf32, #tpu.memory_space<vmem>>, %arg2: memref<512x128xf32, #tpu.memory_space<vmem>>, %arg3: memref<1x128xf32, #tpu.memory_space<vmem>>) attributes {dimension_semantics = [#tpu.dimension_semantics<parallel>], iteration_bounds = array<i64: 1>, scalar_prefetch = 0 : i64, scratch_operands = 0 : i64, tpu.core_type = #tpu.core_type<tc>, window_params = [{transform_indices = @transform_0, window_bounds = array<i64: 1, 512>}, {pipeline_mode = #tpu.pipeline_mode<synchronous>, transform_indices = @transform_1, window_bounds = array<i64: 512, 128>}, {transform_indices = @transform_2, window_bounds = array<i64: 1, 128>}]} {
    %c0 = arith.constant 0 : index
    %c0_0 = arith.constant 0 : index
    %0 = vector.load %arg1[%c0, %c0_0] : memref<1x512xf32, #tpu.memory_space<vmem>>, vector<1x512xf32>
    %c0_1 = arith.constant 0 : index
    %c0_2 = arith.constant 0 : index
    %1 = vector.load %arg2[%c0_1, %c0_2] : memref<512x128xf32, #tpu.memory_space<vmem>>, vector<512x128xf32>
    %cst = arith.constant dense<0.000000e+00> : vector<1x128xf32>
    %2 = tpu.matmul %0, %1, %cst {dimension_numbers = #tpu.dot_dimension_numbers<[1], [0], [0], [1], [0, 0, 1, 1], [], []>} : vector<1x512xf32>, vector<512x128xf32>, vector<1x128xf32> -> vector<1x128xf32>
    %c0_3 = arith.constant 0 : index
    %c0_4 = arith.constant 0 : index
    %3 = vector.load %arg3[%c0_3, %c0_4] : memref<1x128xf32, #tpu.memory_space<vmem>>, vector<1x128xf32>
    tpu.vector_store %arg3[%c0_3, %c0_4], %2 {strides = array<i32>} : memref<1x128xf32, #tpu.memory_space<vmem>>, vector<1x128xf32>,
    return
  }
  func.func @transform_0(%arg0: i32) -> (i32, i32) {
    %c0_i32 = arith.constant 0 : i32
    %c0_i32_0 = arith.constant 0 : i32
    return %arg0, %c0_i32 : i32, i32
  }
  func.func @transform_1(%arg0: i32) -> (i32, i32) {
    %c0_i32 = arith.constant 0 : i32
    %c0_i32_0 = arith.constant 0 : i32
    %c0_i32_1 = arith.constant 0 : i32
    return %c0_i32, %c0_i32_0 : i32, i32
  }
  func.func @transform_2(%arg0: i32) -> (i32, i32) {
    %c0_i32 = arith.constant 0 : i32
    %c0_i32_0 = arith.constant 0 : i32
    return %arg0, %c0_i32 : i32, i32
  }
}

</mosaic_0001>

<llo_original>
// kernel: tpu_custom_call.1
$region0: #{tpu_custom_call.1}
  #allocation0 [shape = 'u32[]', space=smem, size = 0x4, offset = 0x4, fixed_abs, tag = 'smem constant byte address 0x4 - core index']
  #allocation1 [shape = 'u32[72,128]{1,0:T(1,128)}', space=vmem, size = 0x9000, scoped, tag = 'internal scratch']
  %s0 = inlined_call_operand.hbm [shape: f32[1,512], index: 0, kind: input, shape index: {}]
  %s1 = inlined_call_operand.hbm [shape: f32[512,128], index: 1, kind: input, shape index: {}]
  %s2 = inlined_call_operand.hbm [shape: f32[1,128], index: 2, kind: output, shape index: {}]
  %s3 = sld [smem:[#allocation0]]
  $region26: #{tpu_custom_call.1} parent=0
    _
  %s5 = ssub.s32 1, %s3
  %s6 = scalar_select 0, %s5, %s3
  $region1: #{tpu_custom_call.1} parent=0
    #allocation2 [shape = 'u8[2048]{0}', space=vmem, size = 0x800, scoped, tag = 'input window, operand 0, single buffered']
    #allocation3 [shape = 's32[1]{0}', space=sflag, size = 0x4, scoped, tag = 'scoped memory for tpu_custom_call.1']
    #allocation4 [shape = 's32[1]{0}', space=sflag, size = 0x4, scoped, tag = 'scoped memory for tpu_custom_call.1']
    #allocation5 [shape = 'u8[262144]{0}', space=vmem, size = 0x40000, scoped, tag = 'input window, operand 1, single buffered']
    #allocation6 [shape = 's32[1]{0}', space=sflag, size = 0x4, scoped, tag = 'scoped memory for tpu_custom_call.1']
    #allocation7 [shape = 'u8[512]{0}', space=vmem, size = 0x400, scoped, tag = 'output window, operand 0, single buffered']
    %7 = vsyncpa [#allocation3], 0
    %8 = vsyncpa [#allocation6], 0
    %9 = vsyncpa [#allocation4], 0
    // Predicated region
    $region2: #{tpu_custom_call.1} parent=1 // pred_check
      _
    $region3: #{tpu_custom_call.1} parent=1 // pred_check_branch
      %11 = sbr.rel (0) target = $region5
    $region4: #{tpu_custom_call.1} parent=1 // pred_region
      %13 = vsyncadd [#allocation3], 0
      %s15 = sshll.u32 %s0, 4
      %s16 = int_to_ptr.hbm [resolvable:$true] %s15
      %s17 = sshll.u32 [#allocation2], 4
      %s18 = int_to_ptr.vmem [resolvable:$true] %s17
      %20 = dma.hbm_to_vmem [thread:$0]  %s16, 64, %s18, [#allocation3]
    $region5: #{tpu_custom_call.1} parent=1 // pred_fallthru
      _
    // Predicated region
    $region6: #{tpu_custom_call.1} parent=1 // pred_check
      _
    $region7: #{tpu_custom_call.1} parent=1 // pred_check_branch
      %22 = sbr.rel (0) target = $region9
    $region8: #{tpu_custom_call.1} parent=1 // pred_region
      %24 = vsyncadd [#allocation6], 0
      %s25 = sshll.u32 %s1, 4
      %s26 = int_to_ptr.hbm [resolvable:$true] %s25
      %s27 = sshll.u32 [#allocation5], 4
      %s28 = int_to_ptr.vmem [resolvable:$true] %s27
      %33 = dma.hbm_to_vmem [thread:$0]  %s26, 8192, %s28, [#allocation6], 128, 128, 8
    $region9: #{tpu_custom_call.1} parent=1 // pred_fallthru
      _
    // Predicated region
    $region10: #{tpu_custom_call.1} parent=1 // pred_check
      _
    $region11: #{tpu_custom_call.1} parent=1 // pred_check_branch
      %35 = sbr.rel (0) target = $region13
    $region12: #{tpu_custom_call.1} parent=1 // pred_region
      %37 = dma.done [#allocation3], 64
    $region13: #{tpu_custom_call.1} parent=1 // pred_fallthru
      _
    // Predicated region
    $region14: #{tpu_custom_call.1} parent=1 // pred_check
      _
    $region15: #{tpu_custom_call.1} parent=1 // pred_check_branch
      %39 = sbr.rel (0) target = $region17
    $region16: #{tpu_custom_call.1} parent=1 // pred_region
      %41 = dma.done [#allocation6], 8192
    $region17: #{tpu_custom_call.1} parent=1 // pred_fallthru
      _
    %v42 = vld [vmem:[#allocation2] sm:$0xf]
    %v43 = vld [vmem:[#allocation5] sm:$0xff]
    %v44 = vld [vmem:[#allocation5 + $0x8] sm:$0xff]
    %v45 = vld [vmem:[#allocation5 + $0x10] sm:$0xff]
    %v46 = vld [vmem:[#allocation5 + $0x18] sm:$0xff]
    %v47 = vld [vmem:[#allocation5 + $0x20] sm:$0xff]
    %v48 = vld [vmem:[#allocation5 + $0x28] sm:$0xff]
    %v49 = vld [vmem:[#allocation5 + $0x30] sm:$0xff]
    %v50 = vld [vmem:[#allocation5 + $0x38] sm:$0xff]
    %v51 = vld [vmem:[#allocation5 + $0x40] sm:$0xff]
    %v52 = vld [vmem:[#allocation5 + $0x48] sm:$0xff]
    %v53 = vld [vmem:[#allocation5 + $0x50] sm:$0xff]
    %v54 = vld [vmem:[#allocation5 + $0x58] sm:$0xff]
    %v55 = vld [vmem:[#allocation5 + $0x60] sm:$0xff]
    %v56 = vld [vmem:[#allocation5 + $0x68] sm:$0xff]
    %v57 = vld [vmem:[#allocation5 + $0x70] sm:$0xff]
    %v58 = vld [vmem:[#allocation5 + $0x78] sm:$0xff]
    %v59 = vld [vmem:[#allocation5 + $0x80] sm:$0xff]
    %v60 = vld [vmem:[#allocation5 + $0x88] sm:$0xff]
    %v61 = vld [vmem:[#allocation5 + $0x90] sm:$0xff]
    %v62 = vld [vmem:[#allocation5 + $0x98] sm:$0xff]
    %v63 = vld [vmem:[#allocation5 + $0xa0] sm:$0xff]
    %v64 = vld [vmem:[#allocation5 + $0xa8] sm:$0xff]
    %v65 = vld [vmem:[#allocation5 + $0xb0] sm:$0xff]
    %v66 = vld [vmem:[#allocation5 + $0xb8] sm:$0xff]
    %v67 = vld [vmem:[#allocation5 + $0xc0] sm:$0xff]
    %v68 = vld [vmem:[#allocation5 + $0xc8] sm:$0xff]
    %v69 = vld [vmem:[#allocation5 + $0xd0] sm:$0xff]
    %v70 = vld [vmem:[#allocation5 + $0xd8] sm:$0xff]
    %v71 = vld [vmem:[#allocation5 + $0xe0] sm:$0xff]
    %v72 = vld [vmem:[#allocation5 + $0xe8] sm:$0xff]
    %v73 = vld [vmem:[#allocation5 + $0xf0] sm:$0xff]
    %v74 = vld [vmem:[#allocation5 + $0xf8] sm:$0xff]
    %v75 = vld [vmem:[#allocation5 + $0x100] sm:$0xff]
    %v76 = vld [vmem:[#allocation5 + $0x108] sm:$0xff]
    %v77 = vld [vmem:[#allocation5 + $0x110] sm:$0xff]
    %v78 = vld [vmem:[#allocation5 + $0x118] sm:$0xff]
    %v79 = vld [vmem:[#allocation5 + $0x120] sm:$0xff]
    %v80 = vld [vmem:[#allocation5 + $0x128] sm:$0xff]
    %v81 = vld [vmem:[#allocation5 + $0x130] sm:$0xff]
    %v82 = vld [vmem:[#allocation5 + $0x138] sm:$0xff]
    %v83 = vld [vmem:[#allocation5 + $0x140] sm:$0xff]
    %v84 = vld [vmem:[#allocation5 + $0x148] sm:$0xff]
    %v85 = vld [vmem:[#allocation5 + $0x150] sm:$0xff]
    %v86 = vld [vmem:[#allocation5 + $0x158] sm:$0xff]
    %v87 = vld [vmem:[#allocation5 + $0x160] sm:$0xff]
    %v88 = vld [vmem:[#allocation5 + $0x168] sm:$0xff]
    %v89 = vld [vmem:[#allocation5 + $0x170] sm:$0xff]
    %v90 = vld [vmem:[#allocation5 + $0x178] sm:$0xff]
    %v91 = vld [vmem:[#allocation5 + $0x180] sm:$0xff]
    %v92 = vld [vmem:[#allocation5 + $0x188] sm:$0xff]
    %v93 = vld [vmem:[#allocation5 + $0x190] sm:$0xff]
    %v94 = vld [vmem:[#allocation5 + $0x198] sm:$0xff]
    %v95 = vld [vmem:[#allocation5 + $0x1a0] sm:$0xff]
    %v96 = vld [vmem:[#allocation5 + $0x1a8] sm:$0xff]
    %v97 = vld [vmem:[#allocation5 + $0x1b0] sm:$0xff]
    %v98 = vld [vmem:[#allocation5 + $0x1b8] sm:$0xff]
    %v99 = vld [vmem:[#allocation5 + $0x1c0] sm:$0xff]
    %v100 = vld [vmem:[#allocation5 + $0x1c8] sm:$0xff]
    %v101 = vld [vmem:[#allocation5 + $0x1d0] sm:$0xff]
    %v102 = vld [vmem:[#allocation5 + $0x1d8] sm:$0xff]
    %v103 = vld [vmem:[#allocation5 + $0x1e0] sm:$0xff]
    %v104 = vld [vmem:[#allocation5 + $0x1e8] sm:$0xff]
    %v105 = vld [vmem:[#allocation5 + $0x1f0] sm:$0xff]
    %v106 = vld [vmem:[#allocation5 + $0x1f8] sm:$0xff]
    %v108 = vperm.slane %v42, 0
    %v109 = vperm.slane %v42, 1
    %v110 = vperm.slane %v42, 2
    %v111 = vperm.slane %v42, 3
    %116 = vmatpush.msra.mxu0 %v58
    %117 = vmatpush.msra.mxu0 %v57
    %118 = vmatpush.msra.mxu0 %v56
    %119 = vmatpush.msra.mxu0 %v55
    %120 = vmatpush.msra.mxu0 %v54
    %121 = vmatpush.msra.mxu0 %v53
    %122 = vmatpush.msra.mxu0 %v52
    %123 = vmatpush.msra.mxu0 %v51
    %124 = vmatpush.msra.mxu0 %v50
    %125 = vmatpush.msra.mxu0 %v49
    %126 = vmatpush.msra.mxu0 %v48
    %127 = vmatpush.msra.mxu0 %v47
    %128 = vmatpush.msra.mxu0 %v46
    %129 = vmatpush.msra.mxu0 %v45
    %130 = vmatpush.msra.mxu0 %v44
    %131 = vmatpush.msra.mxu0 %v43
    %132 = vmatmul.f32.gmra.mxu0 %v108
    %v133 = vpop.f32.mrf.mxu0
    %v134 = vadd.f32 0.0, %v133
    %135 = vdwg.mxu0
    %136 = vmatpush.msra.mxu0 %v74
    %137 = vmatpush.msra.mxu0 %v73
    %138 = vmatpush.msra.mxu0 %v72
    %139 = vmatpush.msra.mxu0 %v71
    %140 = vmatpush.msra.mxu0 %v70
    %141 = vmatpush.msra.mxu0 %v69
    %142 = vmatpush.msra.mxu0 %v68
    %143 = vmatpush.msra.mxu0 %v67
    %144 = vmatpush.msra.mxu0 %v66
    %145 = vmatpush.msra.mxu0 %v65
    %146 = vmatpush.msra.mxu0 %v64
    %147 = vmatpush.msra.mxu0 %v63
    %148 = vmatpush.msra.mxu0 %v62
    %149 = vmatpush.msra.mxu0 %v61
    %150 = vmatpush.msra.mxu0 %v60
    %151 = vmatpush.msra.mxu0 %v59
    %152 = vmatmul.f32.gmra.mxu0 %v109
    %v153 = vpop.f32.mrf.mxu0
    %v154 = vadd.f32 %v134, %v153
    %155 = vdwg.mxu0
    %156 = vmatpush.msra.mxu0 %v90
    %157 = vmatpush.msra.mxu0 %v89
    %158 = vmatpush.msra.mxu0 %v88
    %159 = vmatpush.msra.mxu0 %v87
    %160 = vmatpush.msra.mxu0 %v86
    %161 = vmatpush.msra.mxu0 %v85
    %162 = vmatpush.msra.mxu0 %v84
    %163 = vmatpush.msra.mxu0 %v83
    %164 = vmatpush.msra.mxu0 %v82
    %165 = vmatpush.msra.mxu0 %v81
    %166 = vmatpush.msra.mxu0 %v80
    %167 = vmatpush.msra.mxu0 %v79
    %168 = vmatpush.msra.mxu0 %v78
    %169 = vmatpush.msra.mxu0 %v77
    %170 = vmatpush.msra.mxu0 %v76
    %171 = vmatpush.msra.mxu0 %v75
    %172 = vmatmul.f32.gmra.mxu0 %v110
    %v173 = vpop.f32.mrf.mxu0
    %v174 = vadd.f32 %v154, %v173
    %175 = vdwg.mxu0
    %176 = vmatpush.msra.mxu0 %v106
    %177 = vmatpush.msra.mxu0 %v105
    %178 = vmatpush.msra.mxu0 %v104
    %179 = vmatpush.msra.mxu0 %v103
    %180 = vmatpush.msra.mxu0 %v102
    %181 = vmatpush.msra.mxu0 %v101
    %182 = vmatpush.msra.mxu0 %v100
    %183 = vmatpush.msra.mxu0 %v99
    %184 = vmatpush.msra.mxu0 %v98
    %185 = vmatpush.msra.mxu0 %v97
    %186 = vmatpush.msra.mxu0 %v96
    %187 = vmatpush.msra.mxu0 %v95
    %188 = vmatpush.msra.mxu0 %v94
    %189 = vmatpush.msra.mxu0 %v93
    %190 = vmatpush.msra.mxu0 %v92
    %191 = vmatpush.msra.mxu0 %v91
    %192 = vmatmul.f32.gmra.mxu0 %v111
    %v193 = vpop.f32.mrf.mxu0
    %v194 = vadd.f32 %v174, %v193
    %195 = vdwg.mxu0
    %196 = vst [vmem:[#allocation7] sm:$0x1] %v194
    // Predicated region
    $region18: #{tpu_custom_call.1} parent=1 // pred_check
      _
    $region19: #{tpu_custom_call.1} parent=1 // pred_check_branch
      %198 = sbr.rel (0) target = $region21
    $region20: #{tpu_custom_call.1} parent=1 // pred_region
      %200 = vsyncadd [#allocation4], 0
      %s202 = sshll.u32 [#allocation7], 4
      %s203 = int_to_ptr.vmem [resolvable:$true] %s202
      %s204 = sshll.u32 %s2, 4
      %s205 = int_to_ptr.hbm [resolvable:$true] %s204
      %207 = dma.vmem_to_hbm [thread:$0]  %s203, 16, %s205, [#allocation4]
    $region21: #{tpu_custom_call.1} parent=1 // pred_fallthru
      _
    // Predicated region
    $region22: #{tpu_custom_call.1} parent=1 // pred_check
      _
    $region23: #{tpu_custom_call.1} parent=1 // pred_check_branch
      %209 = sbr.rel (0) target = $region25
    $region24: #{tpu_custom_call.1} parent=1 // pred_region
      %211 = dma.done [#allocation4], 16
    $region25: #{tpu_custom_call.1} parent=1 // pred_fallthru
      _
    %212 = vsyncpa [#allocation3], 1
    %213 = vsyncpa [#allocation6], 1
    %214 = vsyncpa [#allocation4], 1

</llo_original>
